<compile_context>
chip_gen: v6e
topology: v6e:2x2x1
jax: 0.10.0
libtpu: 0.0.40
codegen_flags: <defaults>
</compile_context>

<pallas_src>
import math

import jax
import jax.numpy as jnp
from jax.experimental import pallas as pl
from jax.experimental.pallas import tpu as pltpu


# ----------------------------------------------------------------------------- kernels
def _make_head_kernel(k_axis: int, cast_x: bool, use_scratch: bool):
    """Tiled  out = x @ W + b  with the accumulator resident across the k (=nf) grid axis.

    Bias is loaded into the accumulator at k==0 (no extra add at finalize). When the output
    dtype is f32 the output block itself is the accumulator (no VMEM scratch).
    """

    def _maybe_cast(v):
        return v.astype(jnp.bfloat16) if cast_x else v

    if not use_scratch:
        def kernel(x_ref, w_ref, b_ref, o_ref):
            kk = pl.program_id(k_axis)

            @pl.when(kk == 0)
            def _init():
                o_ref[...] = jnp.broadcast_to(b_ref[...], o_ref.shape).astype(o_ref.dtype)

            o_ref[...] += jnp.dot(_maybe_cast(x_ref[...]), w_ref[...],
                                  preferred_element_type=jnp.float32)

        return kernel

    def kernel(x_ref, w_ref, b_ref, o_ref, acc_ref):
        kk = pl.program_id(k_axis)

        @pl.when(kk == 0)
        def _init():
            acc_ref[...] = jnp.broadcast_to(b_ref[...].astype(jnp.float32), acc_ref.shape)

        acc_ref[...] += jnp.dot(_maybe_cast(x_ref[...]), w_ref[...],
                                preferred_element_type=jnp.float32)

        @pl.when(kk == pl.num_programs(k_axis) - 1)
        def _fin():
            o_ref[...] = acc_ref[...].astype(o_ref.dtype)

    return kernel


# ----------------------------------------------------------------------------- tiling helpers
_VMEM_TILE_BUDGET = 24 << 20   # keep tiles well under v7x's 64 MiB physical VMEM
_VMEM_LIMIT_BYTES = 48 << 20   # raise the scoped limit (v5e default is only 16 MiB)


def _pad_to(n: int, m: int) -> int:
    return ((n + m - 1) // m) * m


def _divisor_tile(dim: int, align: int, pref: int) -> int:
    """Largest multiple of `align` <= pref that divides `dim` (dim must be a multiple of align)."""
    t = min(pref, dim)
    t = max(align, t - (t % align))
    while dim % t:
        t -= align
    return t


def _plan_tiles(M, nf_p, T_p, x_bytes, w_bytes, o_bytes, prefer_two_n_tiles):
    """Pick (Mp, tm, tk, tn). tm = full M when the row panel + output fit the VMEM budget,
    so the weight is streamed from HBM exactly once."""
    tn = _divisor_tile(T_p, 128, 512)
    tk = _divisor_tile(nf_p, 128, 1024)
    fixed = 2 * tk * tn * w_bytes + 2 * tn * 4                # W + bias double buffers
    per_row = 2 * tk * x_bytes + 2 * tn * o_bytes             # x double buffer + resident out
    cap = max(16, (_VMEM_TILE_BUDGET - fixed) // per_row)
    if M <= cap:
        Mp, tm = M, M                                         # single pass over W
    else:
        tm = max(16, (min(cap, 512) // 16) * 16)              # 16-aligned for bf16 MXU feed
        Mp = _pad_to(M, tm)
    # keep >= 2 output tiles on the n axis so megacore still has a parallel axis to shard
    if prefer_two_n_tiles and Mp == tm and T_p // tn < 2 and T_p >= 256:
        tn = _divisor_tile(T_p, 128, T_p // 2)
    return Mp, tm, tk, tn


# ----------------------------------------------------------------------------- forward
def flatten_head_forward(x, params, individual: bool, use_bf16: bool = True):
    """x: [B, n_vars, d_model, patch_num] -> [B, n_vars, target_window]."""
    B, V, D, P = x.shape
    nf = D * P
    W, b = params["W"], params["b"]
    T = W.shape[-1]
    out_dtype = x.dtype

    nf_p = _pad_to(nf, 128)
    T_p = _pad_to(T, 128)
    w_dtype = jnp.bfloat16 if use_bf16 else W.dtype
    cast_x = use_bf16 and x.dtype != jnp.bfloat16
    use_scratch = out_dtype != jnp.float32
    x_bytes = jnp.dtype(x.dtype).itemsize
    w_bytes = jnp.dtype(w_dtype).itemsize
    o_bytes = jnp.dtype(out_dtype).itemsize

    if not individual:
        # ---- shared head: one [M, nf] @ [nf, T] matmul, M = B*V ----------------------------
        M = B * V
        Mp, tm, tk, tn = _plan_tiles(M, nf_p, T_p, x_bytes, w_bytes, o_bytes,
                                     prefer_two_n_tiles=True)

        x2d = x.reshape(M, nf)
        if nf_p != nf or Mp != M:
            x2d = jnp.pad(x2d, ((0, Mp - M), (0, nf_p - nf)))
        Wp = W
        if nf_p != nf or T_p != T:
            Wp = jnp.pad(Wp, ((0, nf_p - nf), (0, T_p - T)))
        Wp = Wp.astype(w_dtype)                       # bf16 weights: halves the HBM stream
        bp = b if T_p == T else jnp.pad(b, (0, T_p - T))
        bp = bp.reshape(1, T_p).astype(jnp.float32)

        grid = (Mp // tm, T_p // tn, nf_p // tk)
        kernel = _make_head_kernel(k_axis=2, cast_x=cast_x, use_scratch=use_scratch)
        scratch = (pltpu.VMEM((tm, tn), jnp.float32),) if use_scratch else ()

        out2d = pl.pallas_call(
            kernel,
            out_shape=jax.ShapeDtypeStruct((Mp, T_p), out_dtype),
            grid_spec=pltpu.PrefetchScalarGridSpec(
                num_scalar_prefetch=0,
                grid=grid,
                in_specs=[
                    pl.BlockSpec((tm, tk), lambda i, j, k: (i, k)),
                    pl.BlockSpec((tk, tn), lambda i, j, k: (k, j)),
                    pl.BlockSpec((1, tn), lambda i, j, k: (0, j)),
                ],
                out_specs=pl.BlockSpec((tm, tn), lambda i, j, k: (i, j)),
                scratch_shapes=scratch,
            ),
            compiler_params=pltpu.CompilerParams(
                dimension_semantics=("parallel", "parallel", "arbitrary"),
                vmem_limit_bytes=_VMEM_LIMIT_BYTES),
        )(x2d, Wp, bp)
        return out2d[:M, :T].reshape(B, V, T)

    # ---- individual heads: fold the variable index into k / n block indices (no transposes) --
    Mp, tm, tk, tn = _plan_tiles(B, nf_p, T_p, x_bytes, w_bytes, o_bytes,
                                 prefer_two_n_tiles=(V < 2))
    nkb = nf_p // tk          # k-blocks per variable
    ntb = T_p // tn           # n-blocks per variable

    x3 = x.reshape(B, V, nf)
    if nf_p != nf or Mp != B:
        x3 = jnp.pad(x3, ((0, Mp - B), (0, 0), (0, nf_p - nf)))
    x2d = x3.reshape(Mp, V * nf_p)                    # contiguous reshape, no HBM transpose

    Wp = W
    if nf_p != nf or T_p != T:
        Wp = jnp.pad(Wp, ((0, 0), (0, nf_p - nf), (0, T_p - T)))
    Wp = Wp.astype(w_dtype)
    bp = b if T_p == T else jnp.pad(b, ((0, 0), (0, T_p - T)))
    bp = bp.reshape(V, 1, T_p).astype(jnp.float32)

    grid = (V, Mp // tm, ntb, nkb)
    kernel = _make_head_kernel(k_axis=3, cast_x=cast_x, use_scratch=use_scratch)
    scratch = (pltpu.VMEM((tm, tn), jnp.float32),) if use_scratch else ()

    out2d = pl.pallas_call(
        kernel,
        out_shape=jax.ShapeDtypeStruct((Mp, V * T_p), out_dtype),
        grid_spec=pltpu.PrefetchScalarGridSpec(
            num_scalar_prefetch=0,
            grid=grid,
            in_specs=[
                pl.BlockSpec((tm, tk), lambda v, i, j, k: (i, v * nkb + k)),        # x [Mp, V*nf_p]
                pl.BlockSpec((None, tk, tn), lambda v, i, j, k: (v, k, j)),         # W [V, nf_p, T_p]
                pl.BlockSpec((None, 1, tn), lambda v, i, j, k: (v, 0, j)),          # b [V, 1, T_p]
            ],
            out_specs=pl.BlockSpec((tm, tn), lambda v, i, j, k: (i, v * ntb + j)),  # o [Mp, V*T_p]
            scratch_shapes=scratch,
        ),
        compiler_params=pltpu.CompilerParams(
            dimension_semantics=("parallel", "parallel", "parallel", "arbitrary"),
            vmem_limit_bytes=_VMEM_LIMIT_BYTES),
    )(x2d, Wp, bp)
    return out2d[:B].reshape(B, V, T_p)[:, :, :T]


# ----------------------------------------------------------------------------- params / reference
def init_params(key, individual: bool, n_vars: int, nf: int, target_window: int):
    """Matches nn.Linear init; weight stored as [nf, T] (transposed vs torch's [T, nf])."""
    kw, kb = jax.random.split(key)
    bound = 1.0 / math.sqrt(nf)
    if individual:
        W = jax.random.uniform(kw, (n_vars, nf, target_window), jnp.float32, -bound, bound)
        b = jax.random.uniform(kb, (n_vars, target_window), jnp.float32, -bound, bound)
    else:
        W = jax.random.uniform(kw, (nf, target_window), jnp.float32, -bound, bound)
        b = jax.random.uniform(kb, (target_window,), jnp.float32, -bound, bound)
    return {"W": W, "b": b}


def reference_forward(x, params, individual: bool):
    B, V, D, P = x.shape
    hi = jax.lax.Precision.HIGHEST
    z = x.reshape(B, V, D * P)
    if individual:
        return jnp.einsum("bvf,vft->bvt", z, params["W"], precision=hi) + params["b"][None]
    return jnp.dot(z, params["W"], precision=hi) + params["b"]


# ----------------------------------------------------------------------------- main
if __name__ == "__main__":
    # TODO(synk): nn.Dropout(head_dropout) is the identity for p=0 / eval mode -> omitted.
    def _check(B, V, D, P, T, individual, key):
        kx, kp = jax.random.split(key)
        x = jax.random.normal(kx, (B, V, D, P), jnp.float32)
        params = init_params(kp, individual, V, D * P, T)
        out = flatten_head_forward(x, params, individual=individual)
        jax.block_until_ready(out)
        ref = reference_forward(x, params, individual)
        assert out.shape == (B, V, T), (out.shape, (B, V, T))
        assert bool(jnp.all(jnp.isfinite(out)))
        err = float(jnp.max(jnp.abs(out - ref)))
        assert bool(jnp.allclose(out, ref, rtol=2e-2, atol=2e-2)), err

    keys = jax.random.split(jax.random.PRNGKey(0), 4)
    # 128-aligned shapes: nf = 16*8 = 128, target_window = 128
    _check(2, 4, 16, 8, 128, individual=False, key=keys[0])
    _check(2, 4, 16, 8, 128, individual=True, key=keys[1])
    # non-128-aligned shapes exercise the padding path: nf = 12*8 = 96, target_window = 96
    _check(2, 3, 12, 8, 96, individual=False, key=keys[2])
    _check(2, 3, 12, 8, 96, individual=True, key=keys[3])

    print("KERNEL_OK")
</pallas_src>

<mosaic_0001>
module attributes {stable_mosaic.version = 11 : i64} {
  func.func @kernel(%arg0: i32, %arg1: i32, %arg2: i32, %arg3: memref<8x128xf32, #tpu.memory_space<vmem>>, %arg4: memref<128x128xbf16, #tpu.memory_space<vmem>>, %arg5: memref<1x128xf32, #tpu.memory_space<vmem>>, %arg6: memref<8x128xf32, #tpu.memory_space<vmem>>) attributes {dimension_semantics = [#tpu.dimension_semantics<parallel>, #tpu.dimension_semantics<parallel>, #tpu.dimension_semantics<arbitrary>], iteration_bounds = array<i64: 1, 1, 1>, scalar_prefetch = 0 : i64, scratch_operands = 0 : i64, tpu.core_type = #tpu.core_type<tc>, window_params = [{transform_indices = @transform_0, window_bounds = array<i64: 8, 128>}, {transform_indices = @transform_1, window_bounds = array<i64: 128, 128>}, {transform_indices = @transform_2, window_bounds = array<i64: 1, 128>}, {transform_indices = @transform_3, window_bounds = array<i64: 8, 128>}]} {
    %c0_i32 = arith.constant 0 : i32
    %0 = arith.cmpi eq, %arg2, %c0_i32 : i32
    %1 = arith.extui %0 : i1 to i32
    %c0_i32_0 = arith.constant 0 : i32
    %2 = arith.cmpi ne, %1, %c0_i32_0 : i32
    scf.if %2 {
      %c0_8 = arith.constant 0 : index
      %c0_9 = arith.constant 0 : index
      %10 = vector.load %arg5[%c0_8, %c0_9] : memref<1x128xf32, #tpu.memory_space<vmem>>, vector<1x128xf32>
      %11 = vector.shape_cast %10 : vector<1x128xf32> to vector<1x128xf32>
      %12 = vector.broadcast %11 : vector<1x128xf32> to vector<8x128xf32>
      %c0_10 = arith.constant 0 : index
      %c0_11 = arith.constant 0 : index
      %13 = vector.load %arg6[%c0_10, %c0_11] : memref<8x128xf32, #tpu.memory_space<vmem>>, vector<8x128xf32>
      tpu.vector_store %arg6[%c0_10, %c0_11], %12 {strides = array<i32>} : memref<8x128xf32, #tpu.memory_space<vmem>>, vector<8x128xf32>,
    } else {
    }
    %c0 = arith.constant 0 : index
    %c0_1 = arith.constant 0 : index
    %3 = vector.load %arg6[%c0, %c0_1] : memref<8x128xf32, #tpu.memory_space<vmem>>, vector<8x128xf32>
    %c0_2 = arith.constant 0 : index
    %c0_3 = arith.constant 0 : index
    %4 = vector.load %arg3[%c0_2, %c0_3] : memref<8x128xf32, #tpu.memory_space<vmem>>, vector<8x128xf32>
    %5 = arith.truncf %4 : vector<8x128xf32> to vector<8x128xbf16>
    %c0_4 = arith.constant 0 : index
    %c0_5 = arith.constant 0 : index
    %6 = vector.load %arg4[%c0_4, %c0_5] : memref<128x128xbf16, #tpu.memory_space<vmem>>, vector<128x128xbf16>
    %cst = arith.constant dense<0.000000e+00> : vector<8x128xf32>
    %7 = tpu.matmul %5, %6, %cst {dimension_numbers = #tpu.dot_dimension_numbers<[1], [0], [0], [1], [0, 0, 1, 1], [], []>} : vector<8x128xbf16>, vector<128x128xbf16>, vector<8x128xf32> -> vector<8x128xf32>
    %8 = arith.addf %3, %7 : vector<8x128xf32>
    %c0_6 = arith.constant 0 : index
    %c0_7 = arith.constant 0 : index
    %9 = vector.load %arg6[%c0_6, %c0_7] : memref<8x128xf32, #tpu.memory_space<vmem>>, vector<8x128xf32>
    tpu.vector_store %arg6[%c0_6, %c0_7], %8 {strides = array<i32>} : memref<8x128xf32, #tpu.memory_space<vmem>>, vector<8x128xf32>,
    return
  }
  func.func @transform_0(%arg0: i32, %arg1: i32, %arg2: i32) -> (i32, i32) {
    %c0_i32 = arith.constant 0 : i32
    return %arg0, %arg2 : i32, i32
  }
  func.func @transform_1(%arg0: i32, %arg1: i32, %arg2: i32) -> (i32, i32) {
    %c0_i32 = arith.constant 0 : i32
    return %arg2, %arg1 : i32, i32
  }
  func.func @transform_2(%arg0: i32, %arg1: i32, %arg2: i32) -> (i32, i32) {
    %c0_i32 = arith.constant 0 : i32
    %c0_i32_0 = arith.constant 0 : i32
    return %c0_i32, %arg1 : i32, i32
  }
  func.func @transform_3(%arg0: i32, %arg1: i32, %arg2: i32) -> (i32, i32) {
    %c0_i32 = arith.constant 0 : i32
    return %arg0, %arg1 : i32, i32
  }
}

</mosaic_0001>

<llo_original>
// kernel: tpu_custom_call.1
$region0: #{tpu_custom_call.1}
  #allocation0 [shape = 'u32[]', space=smem, size = 0x4, offset = 0x4, fixed_abs, tag = 'smem constant byte address 0x4 - core index']
  #allocation1 [shape = 'u32[144,128]{1,0:T(1,128)}', space=vmem, size = 0x12000, scoped, tag = 'internal scratch']
  %s0 = inlined_call_operand.hbm [shape: f32[8,128], index: 0, kind: input, shape index: {}]
  %s1 = inlined_call_operand.hbm [shape: bf16[128,128], index: 1, kind: input, shape index: {}]
  %s2 = inlined_call_operand.vmem [shape: f32[1,128], index: 2, kind: input, shape index: {}]
  %s3 = inlined_call_operand.hbm [shape: f32[8,128], index: 3, kind: output, shape index: {}]
  %s4 = sld [smem:[#allocation0]]
  $region34: #{tpu_custom_call.1} parent=0
    _
  %s6 = ssub.s32 1, %s4
  %s7 = scalar_select 0, %s6, %s4
  $region1: #{tpu_custom_call.1} parent=0
    #allocation2 [shape = 'u8[4096]{0}', space=vmem, size = 0x1000, scoped, tag = 'input window, operand 0, single buffered']
    #allocation3 [shape = 's32[1]{0}', space=sflag, size = 0x4, scoped, tag = 'scoped memory for tpu_custom_call.1']
    #allocation4 [shape = 's32[1]{0}', space=sflag, size = 0x4, scoped, tag = 'scoped memory for tpu_custom_call.1']
    #allocation5 [shape = 'u8[32768]{0}', space=vmem, size = 0x8000, scoped, tag = 'input window, operand 1, single buffered']
    #allocation6 [shape = 's32[1]{0}', space=sflag, size = 0x4, scoped, tag = 'scoped memory for tpu_custom_call.1']
    #allocation7 [shape = 'u8[4096]{0}', space=vmem, size = 0x1000, scoped, tag = 'output window, operand 0, single buffered']
    %8 = vsyncpa [#allocation3], 0
    %9 = vsyncpa [#allocation6], 0
    %10 = vsyncpa [#allocation4], 0
    // Predicated region
    $region2: #{tpu_custom_call.1} parent=1 // pred_check
      _
    $region3: #{tpu_custom_call.1} parent=1 // pred_check_branch
      %12 = sbr.rel (0) target = $region5
    $region4: #{tpu_custom_call.1} parent=1 // pred_region
      %s14 = ssub.s32 128, 128
      %15 = vsyncadd [#allocation3], %s14
      %s17 = sshll.u32 [#allocation2], 4
      %s18 = int_to_ptr.vmem [resolvable:$true] %s17
      %20 = dma.hbm_to_vmem [thread:$0]  %s0, 128, %s18, [#allocation3]
    $region5: #{tpu_custom_call.1} parent=1 // pred_fallthru
      _
    // Predicated region
    $region6: #{tpu_custom_call.1} parent=1 // pred_check
      _
    $region7: #{tpu_custom_call.1} parent=1 // pred_check_branch
      %22 = sbr.rel (0) target = $region9
    $region8: #{tpu_custom_call.1} parent=1 // pred_region
      %s24 = ssub.s32 1024, 1024
      %25 = vsyncadd [#allocation6], %s24
      %s26 = sshll.u32 [#allocation5], 4
      %s27 = int_to_ptr.vmem [resolvable:$true] %s26
      %32 = dma.hbm_to_vmem [thread:$0]  %s1, 1024, %s27, [#allocation6], 64, 64, 4
    $region9: #{tpu_custom_call.1} parent=1 // pred_fallthru
      _
    // Predicated region
    $region10: #{tpu_custom_call.1} parent=1 // pred_check
      _
    $region11: #{tpu_custom_call.1} parent=1 // pred_check_branch
      %34 = sbr.rel (0) target = $region13
    $region12: #{tpu_custom_call.1} parent=1 // pred_region
      _
    $region13: #{tpu_custom_call.1} parent=1 // pred_fallthru
      _
    // Predicated region
    $region14: #{tpu_custom_call.1} parent=1 // pred_check
      _
    $region15: #{tpu_custom_call.1} parent=1 // pred_check_branch
      %36 = sbr.rel (0) target = $region17
    $region16: #{tpu_custom_call.1} parent=1 // pred_region
      %37 = dma.done [#allocation3], 128
    $region17: #{tpu_custom_call.1} parent=1 // pred_fallthru
      _
    // Predicated region
    $region18: #{tpu_custom_call.1} parent=1 // pred_check
      _
    $region19: #{tpu_custom_call.1} parent=1 // pred_check_branch
      %39 = sbr.rel (0) target = $region21
    $region20: #{tpu_custom_call.1} parent=1 // pred_region
      %40 = dma.done [#allocation6], 1024
    $region21: #{tpu_custom_call.1} parent=1 // pred_fallthru
      _
    %p42 = scmp.eq.s32.totalorder 0, 0
    // Predicated region
    $region22: #{tpu_custom_call.1} parent=1 // pred_check
      %p43 = pneg %p42
    $region23: #{tpu_custom_call.1} parent=1 // pred_check_branch
      %45 = sbr.rel (%p43) target = $region25
    $region24: #{tpu_custom_call.1} parent=1 // pred_region
      %v46 = vld [vmem:[%s2] sm:$0x1]
      %v48 = vlaneseq
      %v49 = vshrl.u32 %v48, 7
      %v50 = vsub.s32 0, %v49
      %v51 = vrot.slane %v46, %v50
      %53 = vst [vmem:[#allocation7] sm:$0xff] %v51
    $region25: #{tpu_custom_call.1} parent=1 // pred_fallthru
      _
    %v54 = vld [vmem:[#allocation7] sm:$0xff]
    %v55 = vld [vmem:[#allocation2] sm:$0xff]
    %v56 = vpack.c.bf16 %v55, %v55
    %v57 = vld [vmem:[#allocation5] sm:$0xf]
    %v58 = vld [vmem:[#allocation5 + $0x4] sm:$0xf]
    %v59 = vld [vmem:[#allocation5 + $0x8] sm:$0xf]
    %v60 = vld [vmem:[#allocation5 + $0xc] sm:$0xf]
    %v61 = vld [vmem:[#allocation5 + $0x10] sm:$0xf]
    %v62 = vld [vmem:[#allocation5 + $0x14] sm:$0xf]
    %v63 = vld [vmem:[#allocation5 + $0x18] sm:$0xf]
    %v64 = vld [vmem:[#allocation5 + $0x1c] sm:$0xf]
    %v65 = vld [vmem:[#allocation5 + $0x20] sm:$0xf]
    %v66 = vld [vmem:[#allocation5 + $0x24] sm:$0xf]
    %v67 = vld [vmem:[#allocation5 + $0x28] sm:$0xf]
    %v68 = vld [vmem:[#allocation5 + $0x2c] sm:$0xf]
    %v69 = vld [vmem:[#allocation5 + $0x30] sm:$0xf]
    %v70 = vld [vmem:[#allocation5 + $0x34] sm:$0xf]
    %v71 = vld [vmem:[#allocation5 + $0x38] sm:$0xf]
    %v72 = vld [vmem:[#allocation5 + $0x3c] sm:$0xf]
    %v89 = vunpack.c.l.b16 %v57
    %v90 = vunpack.c.l.b16 %v58
    %v91 = vunpack.c.l.b16 %v59
    %v92 = vunpack.c.l.b16 %v60
    %v93 = vunpack.c.l.b16 %v61
    %v94 = vunpack.c.l.b16 %v62
    %v95 = vunpack.c.l.b16 %v63
    %v96 = vunpack.c.l.b16 %v64
    %v97 = vunpack.c.l.b16 %v65
    %v98 = vunpack.c.l.b16 %v66
    %v99 = vunpack.c.l.b16 %v67
    %v100 = vunpack.c.l.b16 %v68
    %v101 = vunpack.c.l.b16 %v69
    %v102 = vunpack.c.l.b16 %v70
    %v103 = vunpack.c.l.b16 %v71
    %v104 = vunpack.c.l.b16 %v72
    %v105 = vpack.c.b16 %v90, %v89
    %v106 = vpack.c.b16 %v92, %v91
    %v107 = vpack.c.b16 %v94, %v93
    %v108 = vpack.c.b16 %v96, %v95
    %v109 = vpack.c.b16 %v98, %v97
    %v110 = vpack.c.b16 %v100, %v99
    %v111 = vpack.c.b16 %v102, %v101
    %v112 = vpack.c.b16 %v104, %v103
    %121 = vmatprep.subr.bf16.mxu0 0
    %122 = vmatpush1.bf16.msra.mxu0 %v112
    %123 = vmatprep.subr.bf16.mxu0 0
    %124 = vmatpush1.bf16.msra.mxu0 %v111
    %125 = vmatprep.subr.bf16.mxu0 0
    %126 = vmatpush1.bf16.msra.mxu0 %v110
    %127 = vmatprep.subr.bf16.mxu0 0
    %128 = vmatpush1.bf16.msra.mxu0 %v109
    %129 = vmatprep.subr.bf16.mxu0 0
    %130 = vmatpush1.bf16.msra.mxu0 %v108
    %131 = vmatprep.subr.bf16.mxu0 0
    %132 = vmatpush1.bf16.msra.mxu0 %v107
    %133 = vmatprep.subr.bf16.mxu0 0
    %134 = vmatpush1.bf16.msra.mxu0 %v106
    %135 = vmatprep.subr.bf16.mxu0 0
    %136 = vmatpush1.bf16.msra.mxu0 %v105
    %137 = vmatprep.subr.bf16.mxu0 0
    %138 = vmatpush2.bf16.msra.mxu0 0
    %139 = vmatprep.subr.bf16.mxu0 0
    %140 = vmatpush2.bf16.msra.mxu0 0
    %141 = vmatprep.subr.bf16.mxu0 0
    %142 = vmatpush2.bf16.msra.mxu0 0
    %143 = vmatprep.subr.bf16.mxu0 0
    %144 = vmatpush2.bf16.msra.mxu0 0
    %145 = vmatprep.subr.bf16.mxu0 0
    %146 = vmatpush2.bf16.msra.mxu0 0
    %147 = vmatprep.subr.bf16.mxu0 0
    %148 = vmatpush2.bf16.msra.mxu0 0
    %149 = vmatprep.subr.bf16.mxu0 0
    %150 = vmatpush2.bf16.msra.mxu0 0
    %151 = vmatprep.subr.bf16.mxu0 0
    %152 = vmatpush2.bf16.msra.mxu0 0
    %153 = vmatprep.mubr.bf16.mxu0 0
    %154 = vmatmul.mubr.bf16.gmra.mxu0 %v56
    %v155 = vpop.f32.mrf.mxu0
    %v156 = vadd.f32 0.0, %v155
    %v157 = vpop.f32.mrf.mxu0
    %v158 = vpop.f32.mrf.mxu0
    %v159 = vpop.f32.mrf.mxu0
    %160 = vdwg.mxu0
    %v161 = vadd.f32 %v54, %v156
    %162 = vst [vmem:[#allocation7] sm:$0xff] %v161
    // Predicated region
    $region26: #{tpu_custom_call.1} parent=1 // pred_check
      _
    $region27: #{tpu_custom_call.1} parent=1 // pred_check_branch
      %164 = sbr.rel (0) target = $region29
    $region28: #{tpu_custom_call.1} parent=1 // pred_region
      %s166 = ssub.s32 128, 128
      %167 = vsyncadd [#allocation4], %s166
      %s169 = sshll.u32 [#allocation7], 4
      %s170 = int_to_ptr.vmem [resolvable:$true] %s169
      %172 = dma.vmem_to_hbm [thread:$0]  %s170, 128, %s3, [#allocation4]
    $region29: #{tpu_custom_call.1} parent=1 // pred_fallthru
      _
    // Predicated region
    $region30: #{tpu_custom_call.1} parent=1 // pred_check
      _
    $region31: #{tpu_custom_call.1} parent=1 // pred_check_branch
      %174 = sbr.rel (0) target = $region33
    $region32: #{tpu_custom_call.1} parent=1 // pred_region
      %175 = dma.done [#allocation4], 128
    $region33: #{tpu_custom_call.1} parent=1 // pred_fallthru
      _
    %176 = vsyncpa [#allocation3], 1
    %177 = vsyncpa [#allocation6], 1
    %178 = vsyncpa [#allocation4], 1

</llo_original>
